<compile_context>
chip_gen: v5e
topology: v5e:2x2
jax: 0.10.0
libtpu: 0.0.40
codegen_flags: <defaults>
</compile_context>

<pallas_src>
import functools

import jax
import jax.numpy as jnp
from jax.experimental import pallas as pl
from jax.experimental.pallas import tpu as pltpu

_LANE = 128
_SUBLANE = 8


def _mean_last_dim_kernel(x_ref, o_ref, *, inv_n: float):
    # x_ref: (tile_r, n) VMEM tile; o_ref: (tile_r, 1)
    x = x_ref[...].astype(jnp.float32)            # f32 accumulation (free for f32 inputs)
    s = jnp.sum(x, axis=-1, keepdims=True)        # sum + scale: no per-tile divide
    o_ref[...] = (s * inv_n).astype(o_ref.dtype)


def global_average_pooling(x: jax.Array, *, block_bytes: int = 2 * 1024 * 1024) -> jax.Array:
    """Pallas TPU equivalent of torch.mean(x, dim=-1)."""
    *lead, n = x.shape
    lead = tuple(lead)
    rows = 1
    for d in lead:
        rows *= d
    x2d = x.reshape(rows, n)

    # --- choose the rows tile so each (double-buffered) input block stays small ---
    # The lane (last) dim is padded to 128 in VMEM; budget with that padding so a
    # small W does not blow up the resident block size.
    itemsize = jnp.dtype(x.dtype).itemsize
    padded_n = ((n + _LANE - 1) // _LANE) * _LANE
    bytes_per_row = max(1, padded_n * itemsize)
    tile_r = max(_SUBLANE, block_bytes // bytes_per_row)
    if tile_r >= rows:
        tile_r = rows                                            # single full-extent block
    else:
        tile_r = max(_SUBLANE, (tile_r // _SUBLANE) * _SUBLANE)  # keep sublane alignment
    # TODO(synk): for extremely large n (hundreds of K elements per row) add a second
    # "arbitrary" grid axis over the reduction dim with a VMEM accumulator.

    grid = (pl.cdiv(rows, tile_r),)

    kernel = functools.partial(_mean_last_dim_kernel, inv_n=1.0 / float(n))

    out2d = pl.pallas_call(
        kernel,
        out_shape=jax.ShapeDtypeStruct((rows, 1), x.dtype),
        grid_spec=pltpu.PrefetchScalarGridSpec(
            num_scalar_prefetch=0,
            grid=grid,
            in_specs=[pl.BlockSpec((tile_r, n), lambda i: (i, 0))],
            out_specs=pl.BlockSpec((tile_r, 1), lambda i: (i, 0)),
        ),
        # Row tiles are independent -> "parallel" lets v7x shard the grid across
        # both TensorCores (two DMA streams into the shared HBM).
        compiler_params=pltpu.CompilerParams(
            dimension_semantics=("parallel",),
        ),
        # Purely bandwidth-bound; tell XLA so it schedules the surrounding graph accordingly.
        cost_estimate=pl.CostEstimate(
            flops=rows * n,
            transcendentals=0,
            bytes_accessed=rows * n * itemsize + rows * itemsize,
        ),
    )(x2d)

    return out2d.reshape(lead)


if __name__ == "__main__":
    key = jax.random.PRNGKey(0)
    # Small NCHW input consistent with the module's forward.
    x = jax.random.normal(key, (2, 4, 16, 16), dtype=jnp.float32)

    y = jax.block_until_ready(global_average_pooling(x))

    # Reference check (same semantics as torch.mean(x, dim=-1)).
    y_ref = jnp.mean(x, axis=-1)
    assert y.shape == y_ref.shape == (2, 4, 16)
    assert jnp.allclose(y, y_ref, atol=1e-5, rtol=1e-5)

    # Also exercise the multi-block pipelined path (grid > 1) with a forced small tile:
    # tile_r = 32 -> grid = (4,) for rows = 128.
    y_tiled = jax.block_until_ready(global_average_pooling(x, block_bytes=32 * _LANE * 4))
    assert jnp.allclose(y_tiled, y_ref, atol=1e-5, rtol=1e-5)

    print("KERNEL_OK")
</pallas_src>

<mosaic_0001>
module attributes {stable_mosaic.version = 11 : i64} {
  func.func @_mean_last_dim_kernel(%arg0: i32, %arg1: memref<128x16xf32, #tpu.memory_space<vmem>>, %arg2: memref<128x1xf32, #tpu.memory_space<vmem>>) attributes {dimension_semantics = [#tpu.dimension_semantics<parallel>], iteration_bounds = array<i64: 1>, scalar_prefetch = 0 : i64, scratch_operands = 0 : i64, tpu.core_type = #tpu.core_type<tc>, window_params = [{transform_indices = @transform_0, window_bounds = array<i64: 128, 16>}, {transform_indices = @transform_1, window_bounds = array<i64: 128, 1>}]} {
    %c0 = arith.constant 0 : index
    %c0_0 = arith.constant 0 : index
    %0 = vector.load %arg1[%c0, %c0_0] : memref<128x16xf32, #tpu.memory_space<vmem>>, vector<128x16xf32>
    %cst = arith.constant dense<0.000000e+00> : vector<128xf32>
    %1 = vector.multi_reduction <add>, %0, %cst [1] : vector<128x16xf32> to vector<128xf32>
    %2 = vector.shape_cast %1 : vector<128xf32> to vector<128x1xf32>
    %cst_1 = arith.constant 6.250000e-02 : f32
    %3 = vector.broadcast %cst_1 : f32 to vector<128x1xf32>
    %4 = arith.mulf %2, %3 : vector<128x1xf32>
    %c0_2 = arith.constant 0 : index
    %c0_3 = arith.constant 0 : index
    %5 = vector.load %arg2[%c0_2, %c0_3] : memref<128x1xf32, #tpu.memory_space<vmem>>, vector<128x1xf32>
    tpu.vector_store %arg2[%c0_2, %c0_3], %4 {strides = array<i32>} : memref<128x1xf32, #tpu.memory_space<vmem>>, vector<128x1xf32>,
    return
  }
  func.func @transform_0(%arg0: i32) -> (i32, i32) {
    %c0_i32 = arith.constant 0 : i32
    %c0_i32_0 = arith.constant 0 : i32
    return %arg0, %c0_i32 : i32, i32
  }
  func.func @transform_1(%arg0: i32) -> (i32, i32) {
    %c0_i32 = arith.constant 0 : i32
    %c0_i32_0 = arith.constant 0 : i32
    return %arg0, %c0_i32 : i32, i32
  }
}

</mosaic_0001>

<llo_original>
// kernel: tpu_custom_call.1
$region0: #{tpu_custom_call.1}
  #allocation0 [shape = 'u32[]', space=smem, size = 0x4, offset = 0x4, fixed_abs, tag = 'smem constant byte address 0x4 - core index']
  #allocation1 [shape = 'u32[72,128]{1,0:T(1,128)}', space=vmem, size = 0x9000, scoped, tag = 'internal scratch']
  %s0 = inlined_call_operand.vmem [shape: f32[128,16], index: 0, kind: input, shape index: {}]
  %s1 = inlined_call_operand.vmem [shape: f32[128,1], index: 1, kind: output, shape index: {}]
  %s2 = sld [smem:[#allocation0]]
  $region14: #{tpu_custom_call.1} parent=0
    _
  %s4 = ssub.s32 1, %s2
  %s5 = scalar_select 0, %s4, %s2
  // Predicated region
  $region2: #{tpu_custom_call.1} parent=0 // pred_check
    _
  $region3: #{tpu_custom_call.1} parent=0 // pred_check_branch
    %7 = sbr.rel (0) target = $region5
  $region4: #{tpu_custom_call.1} parent=0 // pred_region
    _
  $region5: #{tpu_custom_call.1} parent=0 // pred_fallthru
    _
  %v8 = vld [vmem:[%s0] sm:$0xff]
  %v9 = vld [vmem:[%s0 + $0x8] sm:$0xff]
  %v10 = vld [vmem:[%s0 + $0x10] sm:$0xff]
  %v11 = vld [vmem:[%s0 + $0x18] sm:$0xff]
  %v12 = vld [vmem:[%s0 + $0x20] sm:$0xff]
  %v13 = vld [vmem:[%s0 + $0x28] sm:$0xff]
  %v14 = vld [vmem:[%s0 + $0x30] sm:$0xff]
  %v15 = vld [vmem:[%s0 + $0x38] sm:$0xff]
  %v16 = vld [vmem:[%s0 + $0x40] sm:$0xff]
  %v17 = vld [vmem:[%s0 + $0x48] sm:$0xff]
  %v18 = vld [vmem:[%s0 + $0x50] sm:$0xff]
  %v19 = vld [vmem:[%s0 + $0x58] sm:$0xff]
  %v20 = vld [vmem:[%s0 + $0x60] sm:$0xff]
  %v21 = vld [vmem:[%s0 + $0x68] sm:$0xff]
  %v22 = vld [vmem:[%s0 + $0x70] sm:$0xff]
  %v23 = vld [vmem:[%s0 + $0x78] sm:$0xff]
  %vm24 = vcmask 130048
  %v25 = vsel %vm24, %v8, 0.0
  %26 = vadd.xlane.f32.xlu0 %v25
  %v27 = vpop.xlane.xlu0 %26
  %v28 = vsel %vm24, %v9, 0.0
  %29 = vadd.xlane.f32.xlu0 %v28
  %v30 = vpop.xlane.xlu0 %29
  %v31 = vsel %vm24, %v10, 0.0
  %32 = vadd.xlane.f32.xlu0 %v31
  %v33 = vpop.xlane.xlu0 %32
  %v34 = vsel %vm24, %v11, 0.0
  %35 = vadd.xlane.f32.xlu0 %v34
  %v36 = vpop.xlane.xlu0 %35
  %v37 = vsel %vm24, %v12, 0.0
  %38 = vadd.xlane.f32.xlu0 %v37
  %v39 = vpop.xlane.xlu0 %38
  %v40 = vsel %vm24, %v13, 0.0
  %41 = vadd.xlane.f32.xlu0 %v40
  %v42 = vpop.xlane.xlu0 %41
  %v43 = vsel %vm24, %v14, 0.0
  %44 = vadd.xlane.f32.xlu0 %v43
  %v45 = vpop.xlane.xlu0 %44
  %v46 = vsel %vm24, %v15, 0.0
  %47 = vadd.xlane.f32.xlu0 %v46
  %v48 = vpop.xlane.xlu0 %47
  %v49 = vsel %vm24, %v16, 0.0
  %50 = vadd.xlane.f32.xlu0 %v49
  %v51 = vpop.xlane.xlu0 %50
  %v52 = vsel %vm24, %v17, 0.0
  %53 = vadd.xlane.f32.xlu0 %v52
  %v54 = vpop.xlane.xlu0 %53
  %v55 = vsel %vm24, %v18, 0.0
  %56 = vadd.xlane.f32.xlu0 %v55
  %v57 = vpop.xlane.xlu0 %56
  %v58 = vsel %vm24, %v19, 0.0
  %59 = vadd.xlane.f32.xlu0 %v58
  %v60 = vpop.xlane.xlu0 %59
  %v61 = vsel %vm24, %v20, 0.0
  %62 = vadd.xlane.f32.xlu0 %v61
  %v63 = vpop.xlane.xlu0 %62
  %v64 = vsel %vm24, %v21, 0.0
  %65 = vadd.xlane.f32.xlu0 %v64
  %v66 = vpop.xlane.xlu0 %65
  %v67 = vsel %vm24, %v22, 0.0
  %68 = vadd.xlane.f32.xlu0 %v67
  %v69 = vpop.xlane.xlu0 %68
  %v70 = vsel %vm24, %v23, 0.0
  %71 = vadd.xlane.f32.xlu0 %v70
  %v72 = vpop.xlane.xlu0 %71
  %v73 = vmul.f32 %v27, 0.0625
  %v74 = vmul.f32 %v30, 0.0625
  %v75 = vmul.f32 %v33, 0.0625
  %v76 = vmul.f32 %v36, 0.0625
  %v77 = vmul.f32 %v39, 0.0625
  %v78 = vmul.f32 %v42, 0.0625
  %v79 = vmul.f32 %v45, 0.0625
  %v80 = vmul.f32 %v48, 0.0625
  %v81 = vmul.f32 %v51, 0.0625
  %v82 = vmul.f32 %v54, 0.0625
  %v83 = vmul.f32 %v57, 0.0625
  %v84 = vmul.f32 %v60, 0.0625
  %v85 = vmul.f32 %v63, 0.0625
  %v86 = vmul.f32 %v66, 0.0625
  %v87 = vmul.f32 %v69, 0.0625
  %v88 = vmul.f32 %v72, 0.0625
  %vm89 = vcmask 7168
  %90 = vst.msk [vmem:[%s1] sm:$0xff] %vm89, %v73
  %91 = vst.msk [vmem:[%s1 + $0x8] sm:$0xff] %vm89, %v74
  %92 = vst.msk [vmem:[%s1 + $0x10] sm:$0xff] %vm89, %v75
  %93 = vst.msk [vmem:[%s1 + $0x18] sm:$0xff] %vm89, %v76
  %94 = vst.msk [vmem:[%s1 + $0x20] sm:$0xff] %vm89, %v77
  %95 = vst.msk [vmem:[%s1 + $0x28] sm:$0xff] %vm89, %v78
  %96 = vst.msk [vmem:[%s1 + $0x30] sm:$0xff] %vm89, %v79
  %97 = vst.msk [vmem:[%s1 + $0x38] sm:$0xff] %vm89, %v80
  %98 = vst.msk [vmem:[%s1 + $0x40] sm:$0xff] %vm89, %v81
  %99 = vst.msk [vmem:[%s1 + $0x48] sm:$0xff] %vm89, %v82
  %100 = vst.msk [vmem:[%s1 + $0x50] sm:$0xff] %vm89, %v83
  %101 = vst.msk [vmem:[%s1 + $0x58] sm:$0xff] %vm89, %v84
  %102 = vst.msk [vmem:[%s1 + $0x60] sm:$0xff] %vm89, %v85
  %103 = vst.msk [vmem:[%s1 + $0x68] sm:$0xff] %vm89, %v86
  %104 = vst.msk [vmem:[%s1 + $0x70] sm:$0xff] %vm89, %v87
  %105 = vst.msk [vmem:[%s1 + $0x78] sm:$0xff] %vm89, %v88
  // Predicated region
  $region6: #{tpu_custom_call.1} parent=0 // pred_check
    _
  $region7: #{tpu_custom_call.1} parent=0 // pred_check_branch
    %107 = sbr.rel (0) target = $region9
  $region8: #{tpu_custom_call.1} parent=0 // pred_region
    _
  $region9: #{tpu_custom_call.1} parent=0 // pred_fallthru
    _
  // Predicated region
  $region10: #{tpu_custom_call.1} parent=0 // pred_check
    _
  $region11: #{tpu_custom_call.1} parent=0 // pred_check_branch
    %109 = sbr.rel (0) target = $region13
  $region12: #{tpu_custom_call.1} parent=0 // pred_region
    _
  $region13: #{tpu_custom_call.1} parent=0 // pred_fallthru
    _

</llo_original>
